<compile_context>
chip_gen: v5e
topology: v5e:2x2
jax: 0.10.0
libtpu: 0.0.40
codegen_flags: <defaults>
</compile_context>

<pallas_src>
import math
import functools

import jax
import jax.numpy as jnp
from jax import lax
from jax.experimental import pallas as pl
from jax.experimental.pallas import tpu as pltpu


# Contract last dim of x [tm, tk] with last dim of w [tn, tk]  ->  [tm, tn]
_NT_DIMS = (((1,), (1,)), ((), ()))


def _kernel_single_k(x_ref, w_ref, b_ref, o_ref, *, out_scale, negative_slope):
    """K fits in one block: no grid K axis, no accumulator, fused epilogue."""
    acc = lax.dot_general(x_ref[...], w_ref[...], _NT_DIMS,
                          preferred_element_type=jnp.float32)
    # out_scale = scale * sqrt(2); b_ref already holds bias * lr_mul * sqrt(2)
    pre = acc * out_scale + b_ref[...]                       # [tm, tn] + [1, tn]
    o_ref[...] = jnp.where(pre >= 0, pre, negative_slope * pre).astype(o_ref.dtype)


def _kernel_k_loop(x_ref, w_ref, b_ref, o_ref, acc_ref, *, out_scale, negative_slope):
    """Large-K fallback: k-innermost reduction with an f32 VMEM accumulator."""
    k = pl.program_id(2)

    @pl.when(k == 0)
    def _init():
        acc_ref[...] = jnp.zeros_like(acc_ref)

    acc_ref[...] += lax.dot_general(x_ref[...], w_ref[...], _NT_DIMS,
                                    preferred_element_type=jnp.float32)

    @pl.when(k == pl.num_programs(2) - 1)
    def _epilogue():
        pre = acc_ref[...] * out_scale + b_ref[...]
        o_ref[...] = jnp.where(pre >= 0, pre, negative_slope * pre).astype(o_ref.dtype)


def _cdiv(a, b):
    return -(-a // b)


def _round_up(v, m):
    return _cdiv(v, m) * m


def _pick_tile(dim, max_tile, align):
    """Aligned tile <= max(max_tile, align) that minimizes padding waste."""
    dim_a = _round_up(dim, align)
    if dim_a <= max_tile:
        return dim_a
    nblocks = _cdiv(dim_a, max_tile)
    return _round_up(_cdiv(dim, nblocks), align)


_SUBLANE = {4: 8, 2: 16, 1: 32}   # min sublane multiple per dtype byte-width


def equal_linear(x, weight, bias, *, lr_mul=1.0, negative_slope=0.2,
                 max_tm=256, max_tn=512, max_tk=2048, compute_dtype=None):
    """EqualLinear.forward.

    x: [..., in_dim], weight: [out_dim, in_dim] (native layout), bias: [out_dim].
    """
    orig_shape = x.shape
    in_dim = orig_shape[-1]
    x2 = x.reshape(-1, in_dim)
    batch = x2.shape[0]
    out_dim, in_dim_w = weight.shape
    assert in_dim == in_dim_w, "weight/in_dim mismatch"

    scale = 1.0 / math.sqrt(in_dim) * lr_mul
    sqrt2 = 2.0 ** 0.5
    out_scale = scale * sqrt2
    # Fold lr_mul and sqrt(2) into the bias once; keep f32 for the epilogue.
    bias_eff = (bias.astype(jnp.float32) * (lr_mul * sqrt2)).reshape(1, out_dim)

    out_dtype = x.dtype
    if compute_dtype is not None:
        x2 = x2.astype(compute_dtype)
        weight = weight.astype(compute_dtype)

    sub_m = max(_SUBLANE[jnp.dtype(x2.dtype).itemsize],
                _SUBLANE[jnp.dtype(out_dtype).itemsize])

    # Adaptive, alignment-respecting tiles.  tn / tk are lane dims (128-aligned),
    # tm is a sublane dim (dtype-dependent alignment).
    tm = _pick_tile(batch, max_tm, sub_m)
    tn = _pick_tile(out_dim, max_tn, 128)
    tk = _pick_tile(in_dim, max_tk, 128)
    pm = _round_up(batch, tm)
    pn = _round_up(out_dim, tn)
    pk = _round_up(in_dim, tk)

    # v7x megacore: guarantee >= 2 blocks on a "parallel" axis when possible so the
    # grid shards across both TensorCores (no effect on single-TC v5e/v6e).
    if pm // tm == 1 and pn // tn == 1:
        if out_dim > 128:
            tn = _round_up(_cdiv(out_dim, 2), 128)
            pn = _round_up(out_dim, tn)
        elif batch > sub_m:
            tm = _round_up(_cdiv(batch, 2), sub_m)
            pm = _round_up(batch, tm)

    # Pad only when needed (zeros are harmless: K padding contributes 0 to the dot;
    # padded M/N rows/cols are sliced off at the end).
    x_p = x2 if (pm == batch and pk == in_dim) else \
        jnp.pad(x2, ((0, pm - batch), (0, pk - in_dim)))
    w_p = weight if (pn == out_dim and pk == in_dim) else \
        jnp.pad(weight, ((0, pn - out_dim), (0, pk - in_dim)))
    b_p = bias_eff if pn == out_dim else \
        jnp.pad(bias_eff, ((0, 0), (0, pn - out_dim)))

    cost = pl.CostEstimate(
        flops=2 * pm * pn * pk,
        bytes_accessed=(x_p.size * x_p.dtype.itemsize
                        + w_p.size * w_p.dtype.itemsize
                        + b_p.size * b_p.dtype.itemsize
                        + pm * pn * jnp.dtype(out_dtype).itemsize),
        transcendentals=0,
    )

    grid_k = pk // tk
    if grid_k == 1:
        # Fast path: single K block, no accumulator, no predicated branches.
        kernel = functools.partial(_kernel_single_k, out_scale=out_scale,
                                   negative_slope=negative_slope)
        grid = (pm // tm, pn // tn)
        in_specs = [
            pl.BlockSpec((tm, tk), lambda i, j: (i, 0)),    # x tile
            pl.BlockSpec((tn, tk), lambda i, j: (j, 0)),    # weight tile (native layout)
            pl.BlockSpec((1, tn), lambda i, j: (0, j)),     # fused bias tile
        ]
        out_specs = pl.BlockSpec((tm, tn), lambda i, j: (i, j))
        scratch = []
        dims = ("parallel", "parallel")
    else:
        # Large-K fallback: reduction axis innermost, f32 accumulator.
        kernel = functools.partial(_kernel_k_loop, out_scale=out_scale,
                                   negative_slope=negative_slope)
        grid = (pm // tm, pn // tn, grid_k)
        in_specs = [
            pl.BlockSpec((tm, tk), lambda i, j, k: (i, k)),
            pl.BlockSpec((tn, tk), lambda i, j, k: (j, k)),
            pl.BlockSpec((1, tn), lambda i, j, k: (0, j)),
        ]
        out_specs = pl.BlockSpec((tm, tn), lambda i, j, k: (i, j))
        scratch = [pltpu.VMEM((tm, tn), jnp.float32)]
        dims = ("parallel", "parallel", "arbitrary")

    out_p = pl.pallas_call(
        kernel,
        out_shape=jax.ShapeDtypeStruct((pm, pn), out_dtype),
        grid_spec=pltpu.PrefetchScalarGridSpec(
            num_scalar_prefetch=0,
            grid=grid,
            in_specs=in_specs,
            out_specs=out_specs,
            scratch_shapes=scratch,
        ),
        compiler_params=pltpu.CompilerParams(dimension_semantics=dims),
        cost_estimate=cost,
    )(x_p, w_p, b_p)

    out = out_p[:batch, :out_dim]
    return out.reshape(*orig_shape[:-1], out_dim)


def equal_linear_ref(x, weight, bias, *, lr_mul=1.0):
    in_dim = x.shape[-1]
    scale = 1.0 / math.sqrt(in_dim) * lr_mul
    out = x @ (weight * scale).T
    out = out + (bias * lr_mul).reshape(1, -1)
    out = jnp.where(out >= 0, out, 0.2 * out) * (2.0 ** 0.5)
    return out


if __name__ == "__main__":
    key = jax.random.PRNGKey(0)
    k1, k2, k3, k4, k5, k6 = jax.random.split(key, 6)

    # --- Test 1: small aligned-ish shapes (single-K fast path) ---
    batch, in_dim, out_dim = 8, 32, 64
    lr_mul = 1.0
    x = jax.random.normal(k1, (batch, in_dim), dtype=jnp.float32)
    weight = jax.random.normal(k2, (out_dim, in_dim), dtype=jnp.float32) / lr_mul
    bias = jnp.full((out_dim,), 0.1, dtype=jnp.float32)

    out = jax.block_until_ready(equal_linear(x, weight, bias, lr_mul=lr_mul))
    ref = equal_linear_ref(x, weight, bias, lr_mul=lr_mul)
    assert out.shape == (batch, out_dim)
    assert jnp.allclose(out, ref, atol=1e-4, rtol=1e-4), "mismatch vs reference (test 1)"

    # --- Test 2: unaligned shapes (padding + N-split heuristic) and lr_mul != 1 ---
    batch, in_dim, out_dim = 5, 200, 130
    lr_mul = 0.5
    x2 = jax.random.normal(k3, (batch, in_dim), dtype=jnp.float32)
    weight2 = jax.random.normal(k4, (out_dim, in_dim), dtype=jnp.float32) / lr_mul
    bias2 = jnp.full((out_dim,), 0.25, dtype=jnp.float32)

    out2 = jax.block_until_ready(equal_linear(x2, weight2, bias2, lr_mul=lr_mul))
    ref2 = equal_linear_ref(x2, weight2, bias2, lr_mul=lr_mul)
    assert out2.shape == (batch, out_dim)
    assert jnp.allclose(out2, ref2, atol=1e-4, rtol=1e-4), "mismatch vs reference (test 2)"

    # --- Test 3: force the large-K accumulator path (max_tk < in_dim) ---
    batch, in_dim, out_dim = 8, 256, 64
    lr_mul = 1.0
    x3 = jax.random.normal(k5, (batch, in_dim), dtype=jnp.float32)
    weight3 = jax.random.normal(k6, (out_dim, in_dim), dtype=jnp.float32) / lr_mul
    bias3 = jnp.full((out_dim,), 0.05, dtype=jnp.float32)

    out3 = jax.block_until_ready(
        equal_linear(x3, weight3, bias3, lr_mul=lr_mul, max_tk=128))
    ref3 = equal_linear_ref(x3, weight3, bias3, lr_mul=lr_mul)
    assert out3.shape == (batch, out_dim)
    assert jnp.allclose(out3, ref3, atol=1e-4, rtol=1e-4), "mismatch vs reference (test 3)"

    print("KERNEL_OK")
</pallas_src>

<mosaic_0001>
module attributes {stable_mosaic.version = 11 : i64} {
  func.func @_kernel_single_k(%arg0: i32, %arg1: i32, %arg2: memref<8x128xf32, #tpu.memory_space<vmem>>, %arg3: memref<128x128xf32, #tpu.memory_space<vmem>>, %arg4: memref<1x128xf32, #tpu.memory_space<vmem>>, %arg5: memref<8x128xf32, #tpu.memory_space<vmem>>) attributes {dimension_semantics = [#tpu.dimension_semantics<parallel>, #tpu.dimension_semantics<parallel>], iteration_bounds = array<i64: 1, 1>, scalar_prefetch = 0 : i64, scratch_operands = 0 : i64, tpu.core_type = #tpu.core_type<tc>, window_params = [{transform_indices = @transform_0, window_bounds = array<i64: 8, 128>}, {transform_indices = @transform_1, window_bounds = array<i64: 128, 128>}, {transform_indices = @transform_2, window_bounds = array<i64: 1, 128>}, {transform_indices = @transform_3, window_bounds = array<i64: 8, 128>}]} {
    %c0 = arith.constant 0 : index
    %c0_0 = arith.constant 0 : index
    %0 = vector.load %arg2[%c0, %c0_0] : memref<8x128xf32, #tpu.memory_space<vmem>>, vector<8x128xf32>
    %c0_1 = arith.constant 0 : index
    %c0_2 = arith.constant 0 : index
    %1 = vector.load %arg3[%c0_1, %c0_2] : memref<128x128xf32, #tpu.memory_space<vmem>>, vector<128x128xf32>
    %cst = arith.constant dense<0.000000e+00> : vector<8x128xf32>
    %2 = tpu.matmul %0, %1, %cst {dimension_numbers = #tpu.dot_dimension_numbers<[1], [1], [0], [0], [0, 0, 1, 0], [], []>} : vector<8x128xf32>, vector<128x128xf32>, vector<8x128xf32> -> vector<8x128xf32>
    %cst_3 = arith.constant 2.500000e-01 : f32
    %3 = vector.broadcast %cst_3 : f32 to vector<8x128xf32>
    %4 = arith.mulf %2, %3 : vector<8x128xf32>
    %c0_4 = arith.constant 0 : index
    %c0_5 = arith.constant 0 : index
    %5 = vector.load %arg4[%c0_4, %c0_5] : memref<1x128xf32, #tpu.memory_space<vmem>>, vector<1x128xf32>
    %6 = vector.broadcast %5 : vector<1x128xf32> to vector<8x128xf32>
    %7 = arith.addf %4, %6 : vector<8x128xf32>
    %cst_6 = arith.constant 0.000000e+00 : f32
    %8 = vector.broadcast %cst_6 : f32 to vector<8x128xf32>
    %9 = arith.cmpf oge, %7, %8 : vector<8x128xf32>
    %cst_7 = arith.constant 2.000000e-01 : f32
    %10 = vector.broadcast %cst_7 : f32 to vector<8x128xf32>
    %11 = arith.mulf %10, %7 : vector<8x128xf32>
    %12 = arith.select %9, %7, %11 : vector<8x128xi1>, vector<8x128xf32>
    %c0_8 = arith.constant 0 : index
    %c0_9 = arith.constant 0 : index
    %13 = vector.load %arg5[%c0_8, %c0_9] : memref<8x128xf32, #tpu.memory_space<vmem>>, vector<8x128xf32>
    tpu.vector_store %arg5[%c0_8, %c0_9], %12 {strides = array<i32>} : memref<8x128xf32, #tpu.memory_space<vmem>>, vector<8x128xf32>,
    return
  }
  func.func @transform_0(%arg0: i32, %arg1: i32) -> (i32, i32) {
    %c0_i32 = arith.constant 0 : i32
    %c0_i32_0 = arith.constant 0 : i32
    return %arg0, %c0_i32 : i32, i32
  }
  func.func @transform_1(%arg0: i32, %arg1: i32) -> (i32, i32) {
    %c0_i32 = arith.constant 0 : i32
    %c0_i32_0 = arith.constant 0 : i32
    return %arg1, %c0_i32 : i32, i32
  }
  func.func @transform_2(%arg0: i32, %arg1: i32) -> (i32, i32) {
    %c0_i32 = arith.constant 0 : i32
    %c0_i32_0 = arith.constant 0 : i32
    return %c0_i32, %arg1 : i32, i32
  }
  func.func @transform_3(%arg0: i32, %arg1: i32) -> (i32, i32) {
    %c0_i32 = arith.constant 0 : i32
    return %arg0, %arg1 : i32, i32
  }
}

</mosaic_0001>

<llo_original>
// kernel: tpu_custom_call.1
$region0: #{tpu_custom_call.1}
  #allocation0 [shape = 'u32[]', space=smem, size = 0x4, offset = 0x4, fixed_abs, tag = 'smem constant byte address 0x4 - core index']
  #allocation1 [shape = 'u32[72,128]{1,0:T(1,128)}', space=vmem, size = 0x9000, scoped, tag = 'internal scratch']
  %s0 = inlined_call_operand.hbm [shape: f32[8,128], index: 0, kind: input, shape index: {}]
  %s1 = inlined_call_operand.hbm [shape: f32[128,128], index: 1, kind: input, shape index: {}]
  %s2 = inlined_call_operand.vmem [shape: f32[1,128], index: 2, kind: input, shape index: {}]
  %s3 = inlined_call_operand.hbm [shape: f32[8,128], index: 3, kind: output, shape index: {}]
  %s4 = sld [smem:[#allocation0]]
  $region30: #{tpu_custom_call.1} parent=0
    _
  %s6 = ssub.s32 1, %s4
  %s7 = scalar_select 0, %s6, %s4
  $region1: #{tpu_custom_call.1} parent=0
    #allocation2 [shape = 'u8[4096]{0}', space=vmem, size = 0x1000, scoped, tag = 'input window, operand 0, single buffered']
    #allocation3 [shape = 's32[1]{0}', space=sflag, size = 0x4, scoped, tag = 'scoped memory for tpu_custom_call.1']
    #allocation4 [shape = 's32[1]{0}', space=sflag, size = 0x4, scoped, tag = 'scoped memory for tpu_custom_call.1']
    #allocation5 [shape = 'u8[65536]{0}', space=vmem, size = 0x10000, scoped, tag = 'input window, operand 1, single buffered']
    #allocation6 [shape = 's32[1]{0}', space=sflag, size = 0x4, scoped, tag = 'scoped memory for tpu_custom_call.1']
    #allocation7 [shape = 'u8[4096]{0}', space=vmem, size = 0x1000, scoped, tag = 'output window, operand 0, single buffered']
    %8 = vsyncpa [#allocation3], 0
    %9 = vsyncpa [#allocation6], 0
    %10 = vsyncpa [#allocation4], 0
    // Predicated region
    $region2: #{tpu_custom_call.1} parent=1 // pred_check
      _
    $region3: #{tpu_custom_call.1} parent=1 // pred_check_branch
      %12 = sbr.rel (0) target = $region5
    $region4: #{tpu_custom_call.1} parent=1 // pred_region
      %14 = vsyncadd [#allocation3], 0
      %s16 = sshll.u32 %s0, 4
      %s17 = int_to_ptr.hbm [resolvable:$true] %s16
      %s18 = sshll.u32 [#allocation2], 4
      %s19 = int_to_ptr.vmem [resolvable:$true] %s18
      %21 = dma.hbm_to_vmem [thread:$0]  %s17, 128, %s19, [#allocation3]
    $region5: #{tpu_custom_call.1} parent=1 // pred_fallthru
      _
    // Predicated region
    $region6: #{tpu_custom_call.1} parent=1 // pred_check
      _
    $region7: #{tpu_custom_call.1} parent=1 // pred_check_branch
      %23 = sbr.rel (0) target = $region9
    $region8: #{tpu_custom_call.1} parent=1 // pred_region
      %25 = vsyncadd [#allocation6], 0
      %s26 = sshll.u32 %s1, 4
      %s27 = int_to_ptr.hbm [resolvable:$true] %s26
      %s28 = sshll.u32 [#allocation5], 4
      %s29 = int_to_ptr.vmem [resolvable:$true] %s28
      %34 = dma.hbm_to_vmem [thread:$0]  %s27, 2048, %s29, [#allocation6], 128, 128, 8
    $region9: #{tpu_custom_call.1} parent=1 // pred_fallthru
      _
    // Predicated region
    $region10: #{tpu_custom_call.1} parent=1 // pred_check
      _
    $region11: #{tpu_custom_call.1} parent=1 // pred_check_branch
      %36 = sbr.rel (0) target = $region13
    $region12: #{tpu_custom_call.1} parent=1 // pred_region
      _
    $region13: #{tpu_custom_call.1} parent=1 // pred_fallthru
      _
    // Predicated region
    $region14: #{tpu_custom_call.1} parent=1 // pred_check
      _
    $region15: #{tpu_custom_call.1} parent=1 // pred_check_branch
      %38 = sbr.rel (0) target = $region17
    $region16: #{tpu_custom_call.1} parent=1 // pred_region
      %40 = dma.done [#allocation3], 128
    $region17: #{tpu_custom_call.1} parent=1 // pred_fallthru
      _
    // Predicated region
    $region18: #{tpu_custom_call.1} parent=1 // pred_check
      _
    $region19: #{tpu_custom_call.1} parent=1 // pred_check_branch
      %42 = sbr.rel (0) target = $region21
    $region20: #{tpu_custom_call.1} parent=1 // pred_region
      %44 = dma.done [#allocation6], 2048
    $region21: #{tpu_custom_call.1} parent=1 // pred_fallthru
      _
    %v45 = vld [vmem:[#allocation2] sm:$0xff]
    %v46 = vld [vmem:[#allocation5] sm:$0xff]
    %v47 = vld [vmem:[#allocation5 + $0x8] sm:$0xff]
    %v48 = vld [vmem:[#allocation5 + $0x10] sm:$0xff]
    %v49 = vld [vmem:[#allocation5 + $0x18] sm:$0xff]
    %v50 = vld [vmem:[#allocation5 + $0x20] sm:$0xff]
    %v51 = vld [vmem:[#allocation5 + $0x28] sm:$0xff]
    %v52 = vld [vmem:[#allocation5 + $0x30] sm:$0xff]
    %v53 = vld [vmem:[#allocation5 + $0x38] sm:$0xff]
    %v54 = vld [vmem:[#allocation5 + $0x40] sm:$0xff]
    %v55 = vld [vmem:[#allocation5 + $0x48] sm:$0xff]
    %v56 = vld [vmem:[#allocation5 + $0x50] sm:$0xff]
    %v57 = vld [vmem:[#allocation5 + $0x58] sm:$0xff]
    %v58 = vld [vmem:[#allocation5 + $0x60] sm:$0xff]
    %v59 = vld [vmem:[#allocation5 + $0x68] sm:$0xff]
    %v60 = vld [vmem:[#allocation5 + $0x70] sm:$0xff]
    %v61 = vld [vmem:[#allocation5 + $0x78] sm:$0xff]
    %62 = vmatpush.xpose.msra.mxu0 %v61
    %63 = vmatpush.xpose.msra.mxu0 %v60
    %64 = vmatpush.xpose.msra.mxu0 %v59
    %65 = vmatpush.xpose.msra.mxu0 %v58
    %66 = vmatpush.xpose.msra.mxu0 %v57
    %67 = vmatpush.xpose.msra.mxu0 %v56
    %68 = vmatpush.xpose.msra.mxu0 %v55
    %69 = vmatpush.xpose.msra.mxu0 %v54
    %70 = vmatpush.xpose.msra.mxu0 %v53
    %71 = vmatpush.xpose.msra.mxu0 %v52
    %72 = vmatpush.xpose.msra.mxu0 %v51
    %73 = vmatpush.xpose.msra.mxu0 %v50
    %74 = vmatpush.xpose.msra.mxu0 %v49
    %75 = vmatpush.xpose.msra.mxu0 %v48
    %76 = vmatpush.xpose.msra.mxu0 %v47
    %77 = vmatpush.xpose.msra.mxu0 %v46
    %78 = vmatmul.f32.gmra.mxu0 %v45
    %v79 = vpop.f32.mrf.mxu0
    %v80 = vadd.f32 0.0, %v79
    %81 = vdwg.mxu0
    %v82 = vmul.f32 %v80, 0.25
    %v83 = vld [vmem:[%s2] sm:$0x1]
    %v85 = vperm.slane %v83, 0
    %v87 = vadd.f32 %v82, %v85
    %vm88 = vcmp.ge.f32.partialorder %v87, 0.0
    %v89 = vmul.f32 %v87, 0.2
    %v90 = vsel %vm88, %v87, %v89
    %91 = vst [vmem:[#allocation7] sm:$0xff] %v90
    // Predicated region
    $region22: #{tpu_custom_call.1} parent=1 // pred_check
      _
    $region23: #{tpu_custom_call.1} parent=1 // pred_check_branch
      %93 = sbr.rel (0) target = $region25
    $region24: #{tpu_custom_call.1} parent=1 // pred_region
      %95 = vsyncadd [#allocation4], 0
      %s97 = sshll.u32 [#allocation7], 4
      %s98 = int_to_ptr.vmem [resolvable:$true] %s97
      %s99 = sshll.u32 %s3, 4
      %s100 = int_to_ptr.hbm [resolvable:$true] %s99
      %102 = dma.vmem_to_hbm [thread:$0]  %s98, 128, %s100, [#allocation4]
    $region25: #{tpu_custom_call.1} parent=1 // pred_fallthru
      _
    // Predicated region
    $region26: #{tpu_custom_call.1} parent=1 // pred_check
      _
    $region27: #{tpu_custom_call.1} parent=1 // pred_check_branch
      %104 = sbr.rel (0) target = $region29
    $region28: #{tpu_custom_call.1} parent=1 // pred_region
      %106 = dma.done [#allocation4], 128
    $region29: #{tpu_custom_call.1} parent=1 // pred_fallthru
      _
    %107 = vsyncpa [#allocation3], 1
    %108 = vsyncpa [#allocation6], 1
    %109 = vsyncpa [#allocation4], 1

</llo_original>
